<compile_context>
chip_gen: v7x
topology: tpu7x:2x2x1
jax: 0.10.0
libtpu: 0.0.40
codegen_flags: <defaults>
</compile_context>

<pallas_src>
import functools

import jax
import jax.numpy as jnp
from jax.experimental import pallas as pl
from jax.experimental.pallas import tpu as pltpu


def _round_up(x, m):
    return (x + m - 1) // m * m


# ----------------------------------------------------------------------------------
# Kernel
# ----------------------------------------------------------------------------------
def _rnn_agent_kernel(
    # inputs (blocked)
    x_ref,          # (tT, bB, F)   dot dtype
    h0_ref,         # (bB, H)       f32
    # resident weights
    w1_ref,         # (F, H)        dot dtype
    b1_ref,         # (1, H)        f32
    ln_g_ref,       # (1, H)        f32
    ln_b_ref,       # (1, H)        f32
    wgru_ref,       # (2H, 4H)      dot dtype   rows=[x ; h], cols=[r | z | xn | hn]
    bgru_ref,       # (1, 4H)       f32
    whead_ref,      # (H, HP)       dot dtype   [mean | log_std | zero pad] lane-dense
    bhead_ref,      # (1, HP)       f32
    # outputs
    head_out_ref,   # (tT, bB, HP)  f32
    h_out_ref,      # (bB, H)       f32   -- also the recurrent carry (constant block idx over t)
    *,
    hid_size: int,
    use_layernorm: bool,
    hid_activation: str,
    action_dim: int,
    log_std_min: float,
    log_std_max: float,
    block_t: int,
    seq_len: int,
):
    f32 = jnp.float32
    H = hid_size
    dot_dt = w1_ref.dtype
    t = pl.program_id(1)

    # (Re)load the recurrent carry at the start of each batch block's time sweep.
    @pl.when(t == 0)
    def _():
        h_out_ref[...] = h0_ref[...]

    def step(s):
        # ---- fc1 (f32 accumulation) ----
        x = jnp.dot(x_ref[s], w1_ref[...], preferred_element_type=f32) + b1_ref[...]

        # ---- LayerNorm (torch default eps = 1e-5), f32 math ----
        if use_layernorm:
            mu = jnp.mean(x, axis=-1, keepdims=True)
            var = jnp.mean((x - mu) * (x - mu), axis=-1, keepdims=True)
            x = (x - mu) * jax.lax.rsqrt(var + 1e-5)
            x = x * ln_g_ref[...] + ln_b_ref[...]

        # ---- hidden activation ----
        if hid_activation == "relu":
            x = jnp.maximum(x, 0.0)
        else:  # 'tanh'
            x = jnp.tanh(x)

        # ---- GRUCell: single fused (bB, 2H) x (2H, 4H) MXU pass ----
        h = h_out_ref[...]                                          # f32 carry
        xh = jnp.concatenate([x.astype(dot_dt), h.astype(dot_dt)], axis=-1)
        g = jnp.dot(xh, wgru_ref[...], preferred_element_type=f32) + bgru_ref[...]
        r = jax.nn.sigmoid(g[:, 0:H])
        z = jax.nn.sigmoid(g[:, H:2 * H])
        n = jnp.tanh(g[:, 2 * H:3 * H] + r * g[:, 3 * H:4 * H])
        h_new = (1.0 - z) * n + z * h
        h_out_ref[...] = h_new

        # ---- fused output heads: one dot, one lane-dense store ----
        head = (jnp.dot(h_new.astype(dot_dt), whead_ref[...],
                        preferred_element_type=f32) + bhead_ref[...])
        ls = log_std_min + 0.5 * (log_std_max - log_std_min) * (jnp.tanh(head) + 1.0)
        col = jax.lax.broadcasted_iota(jnp.int32, head.shape, 1)
        head = jnp.where(col >= action_dim, ls, head)
        head_out_ref[s] = head.astype(head_out_ref.dtype)

    # Statically unrolled inner time loop.  Only the LAST time block can contain
    # padded steps; gate those so the hidden state is never advanced by padding.
    rem = seq_len % block_t
    for s in range(block_t):
        if rem == 0 or s < rem:
            step(s)
        else:
            pl.when(t < pl.num_programs(1) - 1)(functools.partial(step, s))


# ----------------------------------------------------------------------------------
# Wrappers
# ----------------------------------------------------------------------------------
def rnn_agent_rollout(inputs_seq, h0, packed, args, *,
                      block_b=1024, block_t=8, dot_dtype=jnp.bfloat16):
    """Run a T-step GRU-agent rollout in ONE pallas_call.

    inputs_seq: [T, B, F]  (B = bs * agent_num, flattened)
    h0:         [B, H]
    Returns (mean_seq [T,B,A], log_std_seq [T,B,A], h_final [B,H]) in f32.
    """
    T, B, F = inputs_seq.shape
    H = args["hid_size"]
    A = args["action_dim"]
    HP = packed["w_head"].shape[1]          # lane-padded head width (>= 2A)

    # ---- batch tiling: sublane-aligned blocks; for big B ensure >= 2 blocks so both
    # v7x TensorCores get work on the "parallel" axis ----
    sub = 8 if jnp.dtype(dot_dtype).itemsize >= 4 else 16
    B8 = _round_up(B, sub)
    half = _round_up((B8 + 1) // 2, sub)
    bB = max(sub, min(block_b, half))
    Bp = _round_up(B8, bB)
    nb = Bp // bB

    # ---- time blocking ----
    tT = max(1, min(block_t, T))
    nT = pl.cdiv(T, tT)
    Tp = nT * tT

    x_seq = inputs_seq.astype(dot_dtype)
    h0 = h0.astype(jnp.float32)
    if Tp != T or Bp != B:
        x_seq = jnp.pad(x_seq, ((0, Tp - T), (0, Bp - B), (0, 0)))
    if Bp != B:
        h0 = jnp.pad(h0, ((0, Bp - B), (0, 0)))

    # Matmul weights in the dot dtype; biases / LN params / carry stay f32.
    w1 = packed["w1"].astype(dot_dtype)
    w_gru = packed["w_gru"].astype(dot_dtype)
    w_head = packed["w_head"].astype(dot_dtype)

    kernel = functools.partial(
        _rnn_agent_kernel,
        hid_size=H,
        use_layernorm=bool(args["layernorm"]),
        hid_activation=args["hid_activation"],
        action_dim=A,
        log_std_min=float(args["LOG_STD_MIN"]),
        log_std_max=float(args["LOG_STD_MAX"]),
        block_t=tT,
        seq_len=T,
    )

    def wspec(shape):
        # full-array block, same index every grid step -> stays VMEM-resident
        return pl.BlockSpec(shape, lambda i, t: (0, 0))

    in_specs = [
        pl.BlockSpec((tT, bB, F), lambda i, t: (t, i, 0)),    # x_seq
        pl.BlockSpec((bB, H), lambda i, t: (i, 0)),           # h0
        wspec((F, H)), wspec((1, H)),                         # fc1
        wspec((1, H)), wspec((1, H)),                         # layernorm
        wspec((2 * H, 4 * H)), wspec((1, 4 * H)),             # fused GRU gates
        wspec((H, HP)), wspec((1, HP)),                       # fused, lane-padded heads
    ]
    out_specs = (
        pl.BlockSpec((tT, bB, HP), lambda i, t: (t, i, 0)),   # [mean | log_std | pad]
        pl.BlockSpec((bB, H), lambda i, t: (i, 0)),           # final hidden state / carry
    )

    heads, h_final = pl.pallas_call(
        kernel,
        out_shape=(
            jax.ShapeDtypeStruct((Tp, Bp, HP), jnp.float32),
            jax.ShapeDtypeStruct((Bp, H), jnp.float32),
        ),
        grid_spec=pltpu.PrefetchScalarGridSpec(
            num_scalar_prefetch=0,
            grid=(nb, nT),
            in_specs=in_specs,
            out_specs=out_specs,
        ),
        compiler_params=pltpu.CompilerParams(
            dimension_semantics=("parallel", "arbitrary"),
            vmem_limit_bytes=32 * 1024 * 1024,
        ),
    )(
        x_seq, h0,
        w1, packed["b1"],
        packed["ln_g"], packed["ln_b"],
        w_gru, packed["b_gru"],
        w_head, packed["b_head"],
    )

    mean_seq = heads[:T, :B, :A]
    log_std_seq = heads[:T, :B, A:2 * A]
    return mean_seq, log_std_seq, h_final[:B]


def rnn_agent_forward(inputs, hidden_state, packed, args, *,
                      block_b=1024, dot_dtype=jnp.bfloat16):
    """Single-step forward matching the PyTorch module: returns (mean, log_std, h)."""
    H = args["hid_size"]
    h_in = hidden_state.reshape(-1, H)
    mean_seq, log_std_seq, h = rnn_agent_rollout(
        inputs[None], h_in, packed, args,
        block_b=block_b, block_t=1, dot_dtype=dot_dtype)
    return mean_seq[0], log_std_seq[0], h


# ----------------------------------------------------------------------------------
# Parameters (torch-layout) and packing into the kernel layout
# ----------------------------------------------------------------------------------
def make_params(key, input_shape, hid_size, action_dim):
    """Deterministic synthetic parameters in PyTorch layout (weights [out, in])."""
    ks = jax.random.split(key, 10)
    s = 0.1
    H, A = hid_size, action_dim
    return {
        "fc1_w": s * jax.random.normal(ks[0], (H, input_shape), jnp.float32),
        "fc1_b": s * jax.random.normal(ks[1], (H,), jnp.float32),
        "ln_g": jnp.ones((H,), jnp.float32),
        "ln_b": jnp.zeros((H,), jnp.float32),
        # GRUCell torch layout: weight_ih [3H, H], gate order r | z | n
        "gru_w_ih": s * jax.random.normal(ks[2], (3 * H, H), jnp.float32),
        "gru_b_ih": s * jax.random.normal(ks[3], (3 * H,), jnp.float32),
        "gru_w_hh": s * jax.random.normal(ks[4], (3 * H, H), jnp.float32),
        "gru_b_hh": s * jax.random.normal(ks[5], (3 * H,), jnp.float32),
        "mean_w": s * jax.random.normal(ks[6], (A, H), jnp.float32),
        "mean_b": s * jax.random.normal(ks[7], (A,), jnp.float32),
        "logstd_w": s * jax.random.normal(ks[8], (A, H), jnp.float32),
        "logstd_b": s * jax.random.normal(ks[9], (A,), jnp.float32),
    }


def pack_params(tp, hid_size, action_dim):
    """Torch-layout params -> kernel layout: fused GRU weight, fused lane-padded heads."""
    H, A = hid_size, action_dim
    w_ih, w_hh = tp["gru_w_ih"], tp["gru_w_hh"]
    b_ih, b_hh = tp["gru_b_ih"], tp["gru_b_hh"]
    w_ir, w_iz, w_in = w_ih[:H].T, w_ih[H:2 * H].T, w_ih[2 * H:].T     # [in, out]
    w_hr, w_hz, w_hn = w_hh[:H].T, w_hh[H:2 * H].T, w_hh[2 * H:].T
    b_ir, b_iz, b_in = b_ih[:H], b_ih[H:2 * H], b_ih[2 * H:]
    b_hr, b_hz, b_hn = b_hh[:H], b_hh[H:2 * H], b_hh[2 * H:]
    zz = jnp.zeros((H, H), jnp.float32)

    # Fused GRU weight: rows = [x ; h] (2H), cols = [r | z | x-part-of-n | h-part-of-n] (4H)
    w_gru = jnp.concatenate([
        jnp.concatenate([w_ir, w_iz, w_in, zz], axis=1),
        jnp.concatenate([w_hr, w_hz, zz, w_hn], axis=1),
    ], axis=0)
    b_gru = jnp.concatenate([b_ir + b_hr, b_iz + b_hz, b_in, b_hn])[None]

    # Fused heads [mean | log_std], zero-padded to a lane-dense width (>= 128 lanes).
    hp = _round_up(2 * A, 128)
    w_head = jnp.concatenate([tp["mean_w"].T, tp["logstd_w"].T], axis=1)   # (H, 2A)
    b_head = jnp.concatenate([tp["mean_b"], tp["logstd_b"]])               # (2A,)
    w_head = jnp.pad(w_head, ((0, 0), (0, hp - 2 * A)))
    b_head = jnp.pad(b_head, (0, hp - 2 * A))[None]

    return {
        "w1": tp["fc1_w"].T,                    # [F, H]
        "b1": tp["fc1_b"][None],                # [1, H]
        "ln_g": tp["ln_g"][None],
        "ln_b": tp["ln_b"][None],
        "w_gru": w_gru, "b_gru": b_gru,         # [2H, 4H], [1, 4H]
        "w_head": w_head, "b_head": b_head,     # [H, HP], [1, HP]
    }


# ----------------------------------------------------------------------------------
# Pure-JAX reference (mirrors the PyTorch module exactly, torch-layout params)
# ----------------------------------------------------------------------------------
def _reference_forward(inputs, hidden_state, tp, args):
    H = args["hid_size"]
    x = inputs @ tp["fc1_w"].T + tp["fc1_b"]
    if args["layernorm"]:
        mu = jnp.mean(x, -1, keepdims=True)
        var = jnp.mean((x - mu) ** 2, -1, keepdims=True)
        x = (x - mu) / jnp.sqrt(var + 1e-5) * tp["ln_g"] + tp["ln_b"]
    x = jnp.maximum(x, 0.0) if args["hid_activation"] == "relu" else jnp.tanh(x)
    h_in = hidden_state.reshape(-1, H)
    gi = x @ tp["gru_w_ih"].T + tp["gru_b_ih"]
    gh = h_in @ tp["gru_w_hh"].T + tp["gru_b_hh"]
    r = jax.nn.sigmoid(gi[:, :H] + gh[:, :H])
    z = jax.nn.sigmoid(gi[:, H:2 * H] + gh[:, H:2 * H])
    n = jnp.tanh(gi[:, 2 * H:] + r * gh[:, 2 * H:])
    h = (1 - z) * n + z * h_in
    mean = h @ tp["mean_w"].T + tp["mean_b"]
    ls = jnp.tanh(h @ tp["logstd_w"].T + tp["logstd_b"])
    ls = args["LOG_STD_MIN"] + 0.5 * (args["LOG_STD_MAX"] - args["LOG_STD_MIN"]) * (ls + 1)
    return mean, ls, h


# ----------------------------------------------------------------------------------
# Demo / correctness check
# ----------------------------------------------------------------------------------
if __name__ == "__main__":
    args = {
        "hid_size": 32,
        "action_dim": 6,
        "agent_num": 4,
        "layernorm": True,
        "hid_activation": "relu",
        "LOG_STD_MIN": -20.0,
        "LOG_STD_MAX": 2.0,
    }
    input_shape = 24
    batch_size = 2
    B = batch_size * args["agent_num"]          # flattened (bs * n_agents) rows
    T = 13                                      # ragged vs block_t=8 -> exercises tail masking

    key = jax.random.PRNGKey(0)
    k_in, k_h, k_p, k_seq = jax.random.split(key, 4)

    inputs = jax.random.normal(k_in, (B, input_shape), jnp.float32)
    hidden_state = jax.random.normal(
        k_h, (batch_size, args["agent_num"], args["hid_size"]), jnp.float32)
    torch_params = make_params(k_p, input_shape, args["hid_size"], args["action_dim"])
    packed = pack_params(torch_params, args["hid_size"], args["action_dim"])

    # ---- single-step forward, f32 dot operands: exact module semantics ----
    mean, log_std, h = rnn_agent_forward(inputs, hidden_state, packed, args,
                                         dot_dtype=jnp.float32)
    jax.block_until_ready((mean, log_std, h))
    m_ref, ls_ref, h_ref = _reference_forward(inputs, hidden_state, torch_params, args)
    assert jnp.allclose(mean, m_ref, atol=1e-4, rtol=1e-4)
    assert jnp.allclose(log_std, ls_ref, atol=1e-4, rtol=1e-4)
    assert jnp.allclose(h, h_ref, atol=1e-4, rtol=1e-4)

    # ---- fused multi-step rollout: f32 (tight) and bf16 dot operands (perf path) ----
    x_seq = jax.random.normal(k_seq, (T, B, input_shape), jnp.float32)
    h0_flat = hidden_state.reshape(-1, args["hid_size"])

    for dot_dtype, tol in ((jnp.float32, 1e-4), (jnp.bfloat16, 5e-2)):
        mean_seq, ls_seq, h_final = rnn_agent_rollout(
            x_seq, h0_flat, packed, args, block_t=8, dot_dtype=dot_dtype)
        jax.block_until_ready((mean_seq, ls_seq, h_final))

        h_r = h0_flat
        for t in range(T):
            m_t, ls_t, h_r = _reference_forward(x_seq[t], h_r, torch_params, args)
            assert jnp.allclose(mean_seq[t], m_t, atol=tol, rtol=tol), (dot_dtype, t)
            assert jnp.allclose(ls_seq[t], ls_t, atol=tol, rtol=tol), (dot_dtype, t)
        assert jnp.allclose(h_final, h_r, atol=tol, rtol=tol), dot_dtype

    print("KERNEL_OK")
</pallas_src>

<mosaic_0001>
module attributes {stable_mosaic.version = 11 : i64} {
  func.func @_rnn_agent_kernel(%arg0: i32, %arg1: i32, %arg2: memref<1x8x24xf32, #tpu.memory_space<vmem>>, %arg3: memref<8x32xf32, #tpu.memory_space<vmem>>, %arg4: memref<24x32xf32, #tpu.memory_space<vmem>>, %arg5: memref<1x32xf32, #tpu.memory_space<vmem>>, %arg6: memref<1x32xf32, #tpu.memory_space<vmem>>, %arg7: memref<1x32xf32, #tpu.memory_space<vmem>>, %arg8: memref<64x128xf32, #tpu.memory_space<vmem>>, %arg9: memref<1x128xf32, #tpu.memory_space<vmem>>, %arg10: memref<32x128xf32, #tpu.memory_space<vmem>>, %arg11: memref<1x128xf32, #tpu.memory_space<vmem>>, %arg12: memref<1x8x128xf32, #tpu.memory_space<vmem>>, %arg13: memref<8x32xf32, #tpu.memory_space<vmem>>) attributes {dimension_semantics = [#tpu.dimension_semantics<parallel>, #tpu.dimension_semantics<arbitrary>], iteration_bounds = array<i64: 1, 1>, scalar_prefetch = 0 : i64, scratch_operands = 0 : i64, tpu.core_type = #tpu.core_type<tc>, window_params = [{transform_indices = @transform_0, window_bounds = array<i64: 1, 8, 24>}, {transform_indices = @transform_1, window_bounds = array<i64: 8, 32>}, {pipeline_mode = #tpu.pipeline_mode<synchronous>, transform_indices = @transform_2, window_bounds = array<i64: 24, 32>}, {pipeline_mode = #tpu.pipeline_mode<synchronous>, transform_indices = @transform_3, window_bounds = array<i64: 1, 32>}, {pipeline_mode = #tpu.pipeline_mode<synchronous>, transform_indices = @transform_4, window_bounds = array<i64: 1, 32>}, {pipeline_mode = #tpu.pipeline_mode<synchronous>, transform_indices = @transform_5, window_bounds = array<i64: 1, 32>}, {pipeline_mode = #tpu.pipeline_mode<synchronous>, transform_indices = @transform_6, window_bounds = array<i64: 64, 128>}, {pipeline_mode = #tpu.pipeline_mode<synchronous>, transform_indices = @transform_7, window_bounds = array<i64: 1, 128>}, {pipeline_mode = #tpu.pipeline_mode<synchronous>, transform_indices = @transform_8, window_bounds = array<i64: 32, 128>}, {pipeline_mode = #tpu.pipeline_mode<synchronous>, transform_indices = @transform_9, window_bounds = array<i64: 1, 128>}, {transform_indices = @transform_10, window_bounds = array<i64: 1, 8, 128>}, {transform_indices = @transform_11, window_bounds = array<i64: 8, 32>}]} {
    %c0_i32 = arith.constant 0 : i32
    %0 = arith.cmpi eq, %arg1, %c0_i32 : i32
    %1 = arith.extui %0 : i1 to i32
    %c0_i32_0 = arith.constant 0 : i32
    %2 = arith.cmpi ne, %1, %c0_i32_0 : i32
    scf.if %2 {
      %c0_40 = arith.constant 0 : index
      %c0_41 = arith.constant 0 : index
      %87 = vector.load %arg3[%c0_40, %c0_41] : memref<8x32xf32, #tpu.memory_space<vmem>>, vector<8x32xf32>
      %c0_42 = arith.constant 0 : index
      %c0_43 = arith.constant 0 : index
      %88 = vector.load %arg13[%c0_42, %c0_43] : memref<8x32xf32, #tpu.memory_space<vmem>>, vector<8x32xf32>
      tpu.vector_store %arg13[%c0_42, %c0_43], %87 {strides = array<i32>} : memref<8x32xf32, #tpu.memory_space<vmem>>, vector<8x32xf32>,
    } else {
    }
    %c0 = arith.constant 0 : index
    %c0_1 = arith.constant 0 : index
    %c0_2 = arith.constant 0 : index
    %3 = vector.load %arg2[%c0, %c0_1, %c0_2] : memref<1x8x24xf32, #tpu.memory_space<vmem>>, vector<1x8x24xf32>
    %4 = vector.shape_cast %3 : vector<1x8x24xf32> to vector<8x24xf32>
    %c0_3 = arith.constant 0 : index
    %c0_4 = arith.constant 0 : index
    %5 = vector.load %arg4[%c0_3, %c0_4] : memref<24x32xf32, #tpu.memory_space<vmem>>, vector<24x32xf32>
    %cst = arith.constant dense<0.000000e+00> : vector<8x32xf32>
    %6 = tpu.matmul %4, %5, %cst {dimension_numbers = #tpu.dot_dimension_numbers<[1], [0], [0], [1], [0, 0, 1, 1], [], []>} : vector<8x24xf32>, vector<24x32xf32>, vector<8x32xf32> -> vector<8x32xf32>
    %c0_5 = arith.constant 0 : index
    %c0_6 = arith.constant 0 : index
    %7 = vector.load %arg5[%c0_5, %c0_6] : memref<1x32xf32, #tpu.memory_space<vmem>>, vector<1x32xf32>
    %8 = vector.broadcast %7 : vector<1x32xf32> to vector<8x32xf32>
    %9 = arith.addf %6, %8 : vector<8x32xf32>
    %cst_7 = arith.constant dense<0.000000e+00> : vector<8xf32>
    %10 = vector.multi_reduction <add>, %9, %cst_7 [1] : vector<8x32xf32> to vector<8xf32>
    %11 = vector.shape_cast %10 : vector<8xf32> to vector<8x1xf32>
    %cst_8 = arith.constant 3.200000e+01 : f32
    %12 = vector.broadcast %cst_8 : f32 to vector<8x1xf32>
    %13 = arith.divf %11, %12 : vector<8x1xf32>
    %14 = vector.broadcast %13 : vector<8x1xf32> to vector<8x32xf32>
    %15 = arith.subf %9, %14 : vector<8x32xf32>
    %16 = vector.broadcast %13 : vector<8x1xf32> to vector<8x32xf32>
    %17 = arith.subf %9, %16 : vector<8x32xf32>
    %18 = arith.mulf %15, %17 : vector<8x32xf32>
    %cst_9 = arith.constant dense<0.000000e+00> : vector<8xf32>
    %19 = vector.multi_reduction <add>, %18, %cst_9 [1] : vector<8x32xf32> to vector<8xf32>
    %20 = vector.shape_cast %19 : vector<8xf32> to vector<8x1xf32>
    %cst_10 = arith.constant 3.200000e+01 : f32
    %21 = vector.broadcast %cst_10 : f32 to vector<8x1xf32>
    %22 = arith.divf %20, %21 : vector<8x1xf32>
    %23 = vector.broadcast %13 : vector<8x1xf32> to vector<8x32xf32>
    %24 = arith.subf %9, %23 : vector<8x32xf32>
    %cst_11 = arith.constant 9.99999974E-6 : f32
    %25 = vector.broadcast %cst_11 : f32 to vector<8x1xf32>
    %26 = arith.addf %22, %25 : vector<8x1xf32>
    %27 = math.rsqrt %26 : vector<8x1xf32>
    %28 = vector.broadcast %27 : vector<8x1xf32> to vector<8x32xf32>
    %29 = arith.mulf %24, %28 : vector<8x32xf32>
    %c0_12 = arith.constant 0 : index
    %c0_13 = arith.constant 0 : index
    %30 = vector.load %arg6[%c0_12, %c0_13] : memref<1x32xf32, #tpu.memory_space<vmem>>, vector<1x32xf32>
    %31 = vector.broadcast %30 : vector<1x32xf32> to vector<8x32xf32>
    %32 = arith.mulf %29, %31 : vector<8x32xf32>
    %c0_14 = arith.constant 0 : index
    %c0_15 = arith.constant 0 : index
    %33 = vector.load %arg7[%c0_14, %c0_15] : memref<1x32xf32, #tpu.memory_space<vmem>>, vector<1x32xf32>
    %34 = vector.broadcast %33 : vector<1x32xf32> to vector<8x32xf32>
    %35 = arith.addf %32, %34 : vector<8x32xf32>
    %cst_16 = arith.constant 0.000000e+00 : f32
    %36 = vector.broadcast %cst_16 : f32 to vector<8x32xf32>
    %37 = arith.maximumf %35, %36 : vector<8x32xf32>
    %c0_17 = arith.constant 0 : index
    %c0_18 = arith.constant 0 : index
    %38 = vector.load %arg13[%c0_17, %c0_18] : memref<8x32xf32, #tpu.memory_space<vmem>>, vector<8x32xf32>
    %39 = tpu.concatenate %37, %38 in 1 : vector<8x32xf32>, vector<8x32xf32> -> vector<8x64xf32>
    %c0_19 = arith.constant 0 : index
    %c0_20 = arith.constant 0 : index
    %40 = vector.load %arg8[%c0_19, %c0_20] : memref<64x128xf32, #tpu.memory_space<vmem>>, vector<64x128xf32>
    %cst_21 = arith.constant dense<0.000000e+00> : vector<8x128xf32>
    %41 = tpu.matmul %39, %40, %cst_21 {dimension_numbers = #tpu.dot_dimension_numbers<[1], [0], [0], [1], [0, 0, 1, 1], [], []>} : vector<8x64xf32>, vector<64x128xf32>, vector<8x128xf32> -> vector<8x128xf32>
    %c0_22 = arith.constant 0 : index
    %c0_23 = arith.constant 0 : index
    %42 = vector.load %arg9[%c0_22, %c0_23] : memref<1x128xf32, #tpu.memory_space<vmem>>, vector<1x128xf32>
    %43 = vector.broadcast %42 : vector<1x128xf32> to vector<8x128xf32>
    %44 = arith.addf %41, %43 : vector<8x128xf32>
    %45 = vector.extract_strided_slice %44 {offsets = [0, 0], sizes = [8, 32], strides = [1, 1]} : vector<8x128xf32> to vector<8x32xf32>
    %46 = arith.negf %45 : vector<8x32xf32>
    %47 = math.exp %46 : vector<8x32xf32>
    %cst_24 = arith.constant 1.000000e+00 : f32
    %48 = vector.broadcast %cst_24 : f32 to vector<8x32xf32>
    %49 = arith.addf %48, %47 : vector<8x32xf32>
    %50 = arith.divf %48, %49 : vector<8x32xf32>
    %51 = vector.extract_strided_slice %44 {offsets = [0, 32], sizes = [8, 32], strides = [1, 1]} : vector<8x128xf32> to vector<8x32xf32>
    %52 = arith.negf %51 : vector<8x32xf32>
    %53 = math.exp %52 : vector<8x32xf32>
    %cst_25 = arith.constant 1.000000e+00 : f32
    %54 = vector.broadcast %cst_25 : f32 to vector<8x32xf32>
    %55 = arith.addf %54, %53 : vector<8x32xf32>
    %56 = arith.divf %54, %55 : vector<8x32xf32>
    %57 = vector.extract_strided_slice %44 {offsets = [0, 64], sizes = [8, 32], strides = [1, 1]} : vector<8x128xf32> to vector<8x32xf32>
    %58 = vector.extract_strided_slice %44 {offsets = [0, 96], sizes = [8, 32], strides = [1, 1]} : vector<8x128xf32> to vector<8x32xf32>
    %59 = arith.mulf %50, %58 : vector<8x32xf32>
    %60 = arith.addf %57, %59 : vector<8x32xf32>
    %61 = math.tanh %60 : vector<8x32xf32>
    %cst_26 = arith.constant 1.000000e+00 : f32
    %62 = vector.broadcast %cst_26 : f32 to vector<8x32xf32>
    %63 = arith.subf %62, %56 : vector<8x32xf32>
    %64 = arith.mulf %63, %61 : vector<8x32xf32>
    %65 = arith.mulf %56, %38 : vector<8x32xf32>
    %66 = arith.addf %64, %65 : vector<8x32xf32>
    %c0_27 = arith.constant 0 : index
    %c0_28 = arith.constant 0 : index
    %67 = vector.load %arg13[%c0_27, %c0_28] : memref<8x32xf32, #tpu.memory_space<vmem>>, vector<8x32xf32>
    tpu.vector_store %arg13[%c0_27, %c0_28], %66 {strides = array<i32>} : memref<8x32xf32, #tpu.memory_space<vmem>>, vector<8x32xf32>,
    %c0_29 = arith.constant 0 : index
    %c0_30 = arith.constant 0 : index
    %68 = vector.load %arg10[%c0_29, %c0_30] : memref<32x128xf32, #tpu.memory_space<vmem>>, vector<32x128xf32>
    %cst_31 = arith.constant dense<0.000000e+00> : vector<8x128xf32>
    %69 = tpu.matmul %66, %68, %cst_31 {dimension_numbers = #tpu.dot_dimension_numbers<[1], [0], [0], [1], [0, 0, 1, 1], [], []>} : vector<8x32xf32>, vector<32x128xf32>, vector<8x128xf32> -> vector<8x128xf32>
    %c0_32 = arith.constant 0 : index
    %c0_33 = arith.constant 0 : index
    %70 = vector.load %arg11[%c0_32, %c0_33] : memref<1x128xf32, #tpu.memory_space<vmem>>, vector<1x128xf32>
    %71 = vector.broadcast %70 : vector<1x128xf32> to vector<8x128xf32>
    %72 = arith.addf %69, %71 : vector<8x128xf32>
    %73 = math.tanh %72 : vector<8x128xf32>
    %cst_34 = arith.constant 1.000000e+00 : f32
    %74 = vector.broadcast %cst_34 : f32 to vector<8x128xf32>
    %75 = arith.addf %73, %74 : vector<8x128xf32>
    %cst_35 = arith.constant 1.100000e+01 : f32
    %76 = vector.broadcast %cst_35 : f32 to vector<8x128xf32>
    %77 = arith.mulf %76, %75 : vector<8x128xf32>
    %cst_36 = arith.constant -2.000000e+01 : f32
    %78 = vector.broadcast %cst_36 : f32 to vector<8x128xf32>
    %79 = arith.addf %78, %77 : vector<8x128xf32>
    %80 = tpu.iota {dimensions = array<i32: 1>} : vector<8x128xi32>
    %c6_i32 = arith.constant 6 : i32
    %81 = vector.broadcast %c6_i32 : i32 to vector<8x128xi32>
    %82 = arith.cmpi sge, %80, %81 : vector<8x128xi32>
    %83 = arith.select %82, %79, %72 : vector<8x128xi1>, vector<8x128xf32>
    %c0_37 = arith.constant 0 : index
    %c0_38 = arith.constant 0 : index
    %c0_39 = arith.constant 0 : index
    %84 = vector.load %arg12[%c0_37, %c0_38, %c0_39] : memref<1x8x128xf32, #tpu.memory_space<vmem>>, vector<1x8x128xf32>
    %85 = vector.shape_cast %84 : vector<1x8x128xf32> to vector<8x128xf32>
    %86 = vector.shape_cast %83 : vector<8x128xf32> to vector<1x8x128xf32>
    tpu.vector_store %arg12[%c0_37, %c0_38, %c0_39], %86 {strides = array<i32>} : memref<1x8x128xf32, #tpu.memory_space<vmem>>, vector<1x8x128xf32>,
    return
  }
  func.func @transform_0(%arg0: i32, %arg1: i32) -> (i32, i32, i32) {
    %c0_i32 = arith.constant 0 : i32
    %c0_i32_0 = arith.constant 0 : i32
    return %arg1, %arg0, %c0_i32 : i32, i32, i32
  }
  func.func @transform_1(%arg0: i32, %arg1: i32) -> (i32, i32) {
    %c0_i32 = arith.constant 0 : i32
    %c0_i32_0 = arith.constant 0 : i32
    return %arg0, %c0_i32 : i32, i32
  }
  func.func @transform_2(%arg0: i32, %arg1: i32) -> (i32, i32) {
    %c0_i32 = arith.constant 0 : i32
    %c0_i32_0 = arith.constant 0 : i32
    %c0_i32_1 = arith.constant 0 : i32
    return %c0_i32, %c0_i32_0 : i32, i32
  }
  func.func @transform_3(%arg0: i32, %arg1: i32) -> (i32, i32) {
    %c0_i32 = arith.constant 0 : i32
    %c0_i32_0 = arith.constant 0 : i32
    %c0_i32_1 = arith.constant 0 : i32
    return %c0_i32, %c0_i32_0 : i32, i32
  }
  func.func @transform_4(%arg0: i32, %arg1: i32) -> (i32, i32) {
    %c0_i32 = arith.constant 0 : i32
    %c0_i32_0 = arith.constant 0 : i32
    %c0_i32_1 = arith.constant 0 : i32
    return %c0_i32, %c0_i32_0 : i32, i32
  }
  func.func @transform_5(%arg0: i32, %arg1: i32) -> (i32, i32) {
    %c0_i32 = arith.constant 0 : i32
    %c0_i32_0 = arith.constant 0 : i32
    %c0_i32_1 = arith.constant 0 : i32
    return %c0_i32, %c0_i32_0 : i32, i32
  }
  func.func @transform_6(%arg0: i32, %arg1: i32) -> (i32, i32) {
    %c0_i32 = arith.constant 0 : i32
    %c0_i32_0 = arith.constant 0 : i32
    %c0_i32_1 = arith.constant 0 : i32
    return %c0_i32, %c0_i32_0 : i32, i32
  }
  func.func @transform_7(%arg0: i32, %arg1: i32) -> (i32, i32) {
    %c0_i32 = arith.constant 0 : i32
    %c0_i32_0 = arith.constant 0 : i32
    %c0_i32_1 = arith.constant 0 : i32
    return %c0_i32, %c0_i32_0 : i32, i32
  }
  func.func @transform_8(%arg0: i32, %arg1: i32) -> (i32, i32) {
    %c0_i32 = arith.constant 0 : i32
    %c0_i32_0 = arith.constant 0 : i32
    %c0_i32_1 = arith.constant 0 : i32
    return %c0_i32, %c0_i32_0 : i32, i32
  }
  func.func @transform_9(%arg0: i32, %arg1: i32) -> (i32, i32) {
    %c0_i32 = arith.constant 0 : i32
    %c0_i32_0 = arith.constant 0 : i32
    %c0_i32_1 = arith.constant 0 : i32
    return %c0_i32, %c0_i32_0 : i32, i32
  }
  func.func @transform_10(%arg0: i32, %arg1: i32) -> (i32, i32, i32) {
    %c0_i32 = arith.constant 0 : i32
    %c0_i32_0 = arith.constant 0 : i32
    return %arg1, %arg0, %c0_i32 : i32, i32, i32
  }
  func.func @transform_11(%arg0: i32, %arg1: i32) -> (i32, i32) {
    %c0_i32 = arith.constant 0 : i32
    %c0_i32_0 = arith.constant 0 : i32
    return %arg0, %c0_i32 : i32, i32
  }
}

</mosaic_0001>

<llo_original>
// kernel: tpu_custom_call.1
$region0: #{tpu_custom_call.1}
  #allocation0 [shape = 'u32[]', space=smem, size = 0x4, offset = 0x4, fixed_abs, tag = 'smem constant byte address 0x4 - core index']
  #allocation1 [shape = 'u32[144,128]{1,0:T(1,128)}', space=vmem, size = 0x12000, scoped, tag = 'internal scratch']
  %s0 = inlined_call_operand.hbm [shape: f32[1,8,24], index: 0, kind: input, shape index: {}]
  %s1 = inlined_call_operand.hbm [shape: f32[8,32], index: 1, kind: input, shape index: {}]
  %s2 = inlined_call_operand.hbm [shape: f32[24,32], index: 2, kind: input, shape index: {}]
  %s3 = inlined_call_operand.vmem [shape: f32[1,32], index: 3, kind: input, shape index: {}]
  %s4 = inlined_call_operand.vmem [shape: f32[1,32], index: 4, kind: input, shape index: {}]
  %s5 = inlined_call_operand.vmem [shape: f32[1,32], index: 5, kind: input, shape index: {}]
  %s6 = inlined_call_operand.hbm [shape: f32[64,128], index: 6, kind: input, shape index: {}]
  %s7 = inlined_call_operand.vmem [shape: f32[1,128], index: 7, kind: input, shape index: {}]
  %s8 = inlined_call_operand.hbm [shape: f32[32,128], index: 8, kind: input, shape index: {}]
  %s9 = inlined_call_operand.vmem [shape: f32[1,128], index: 9, kind: input, shape index: {}]
  %s10 = inlined_call_operand.hbm [shape: f32[1,8,128], index: 10, kind: output, shape index: {0}]
  %s11 = inlined_call_operand.hbm [shape: f32[8,32], index: 11, kind: output, shape index: {1}]
  %12 = xla_tuple %s10, %s11
  %s13 = sld [smem:[#allocation0]]
  $region82: #{tpu_custom_call.1} parent=0
    _
  %s15 = ssub.s32 1, %s13
  %s16 = scalar_select 0, %s15, %s13
  $region1: #{tpu_custom_call.1} parent=0
    #allocation2 [shape = 'u8[4096]{0}', space=vmem, size = 0x1000, scoped, tag = 'input window, operand 0, single buffered']
    #allocation3 [shape = 's32[1]{0}', space=sflag, size = 0x4, scoped, tag = 'scoped memory for tpu_custom_call.1']
    #allocation4 [shape = 's32[1]{0}', space=sflag, size = 0x4, scoped, tag = 'scoped memory for tpu_custom_call.1']
    #allocation5 [shape = 'u8[4096]{0}', space=vmem, size = 0x1000, scoped, tag = 'input window, operand 1, single buffered']
    #allocation6 [shape = 's32[1]{0}', space=sflag, size = 0x4, scoped, tag = 'scoped memory for tpu_custom_call.1']
    #allocation7 [shape = 'u8[12288]{0}', space=vmem, size = 0x3000, scoped, tag = 'input window, operand 2, single buffered']
    #allocation8 [shape = 'u8[32768]{0}', space=vmem, size = 0x8000, scoped, tag = 'input window, operand 6, single buffered']
    #allocation9 [shape = 's32[1]{0}', space=sflag, size = 0x4, scoped, tag = 'scoped memory for tpu_custom_call.1']
    #allocation10 [shape = 'u8[16384]{0}', space=vmem, size = 0x4000, scoped, tag = 'input window, operand 8, single buffered']
    #allocation11 [shape = 'u8[4096]{0}', space=vmem, size = 0x1000, scoped, tag = 'output window, operand 0, single buffered']
    #allocation12 [shape = 'u8[4096]{0}', space=vmem, size = 0x1000, scoped, tag = 'output window, operand 1, single buffered']
    #allocation13 [shape = 's32[1]{0}', space=sflag, size = 0x4, scoped, tag = 'scoped memory for tpu_custom_call.1']
    %17 = vsyncpa [#allocation3], 0
    %18 = vsyncpa [#allocation6], 0
    %19 = vsyncpa [#allocation9], 0
    %20 = vsyncpa [#allocation4], 0
    %21 = vsyncpa [#allocation13], 0
    // Predicated region
    $region2: #{tpu_custom_call.1} parent=1 // pred_check
      _
    $region3: #{tpu_custom_call.1} parent=1 // pred_check_branch
      %23 = sbr.rel (0) target = $region5
    $region4: #{tpu_custom_call.1} parent=1 // pred_region
      %s25 = ssub.s32 128, 128
      %26 = vsyncadd [#allocation3], %s25
      %s28 = sshll.u32 [#allocation2], 4
      %s29 = int_to_ptr.vmem [resolvable:$true] %s28
      %31 = dma.hbm_to_vmem [thread:$0]  %s0, 128, %s29, [#allocation3]
    $region5: #{tpu_custom_call.1} parent=1 // pred_fallthru
      _
    // Predicated region
    $region6: #{tpu_custom_call.1} parent=1 // pred_check
      _
    $region7: #{tpu_custom_call.1} parent=1 // pred_check_branch
      %33 = sbr.rel (0) target = $region9
    $region8: #{tpu_custom_call.1} parent=1 // pred_region
      %s35 = ssub.s32 128, 128
      %36 = vsyncadd [#allocation6], %s35
      %s38 = sshll.u32 [#allocation5], 4
      %s39 = int_to_ptr.vmem [resolvable:$true] %s38
      %41 = dma.hbm_to_vmem [thread:$0]  %s1, 128, %s39, [#allocation6]
    $region9: #{tpu_custom_call.1} parent=1 // pred_fallthru
      _
    // Predicated region
    $region10: #{tpu_custom_call.1} parent=1 // pred_check
      _
    $region11: #{tpu_custom_call.1} parent=1 // pred_check_branch
      %43 = sbr.rel (0) target = $region13
    $region12: #{tpu_custom_call.1} parent=1 // pred_region
      %s45 = ssub.s32 384, 384
      %46 = vsyncadd [#allocation6], %s45
      %s47 = sshll.u32 [#allocation7], 4
      %s48 = int_to_ptr.vmem [resolvable:$true] %s47
      %53 = dma.hbm_to_vmem [thread:$0]  %s2, 384, %s48, [#allocation6], 128, 128, 8
    $region13: #{tpu_custom_call.1} parent=1 // pred_fallthru
      _
    // Predicated region
    $region14: #{tpu_custom_call.1} parent=1 // pred_check
      _
    $region15: #{tpu_custom_call.1} parent=1 // pred_check_branch
      %55 = sbr.rel (0) target = $region17
    $region16: #{tpu_custom_call.1} parent=1 // pred_region
      _
    $region17: #{tpu_custom_call.1} parent=1 // pred_fallthru
      _
    // Predicated region
    $region18: #{tpu_custom_call.1} parent=1 // pred_check
      _
    $region19: #{tpu_custom_call.1} parent=1 // pred_check_branch
      %57 = sbr.rel (0) target = $region21
    $region20: #{tpu_custom_call.1} parent=1 // pred_region
      _
    $region21: #{tpu_custom_call.1} parent=1 // pred_fallthru
      _
    // Predicated region
    $region22: #{tpu_custom_call.1} parent=1 // pred_check
      _
    $region23: #{tpu_custom_call.1} parent=1 // pred_check_branch
      %59 = sbr.rel (0) target = $region25
    $region24: #{tpu_custom_call.1} parent=1 // pred_region
      _
    $region25: #{tpu_custom_call.1} parent=1 // pred_fallthru
      _
    // Predicated region
    $region26: #{tpu_custom_call.1} parent=1 // pred_check
      _
    $region27: #{tpu_custom_call.1} parent=1 // pred_check_branch
      %61 = sbr.rel (0) target = $region29
    $region28: #{tpu_custom_call.1} parent=1 // pred_region
      %s63 = ssub.s32 1024, 1024
      %64 = vsyncadd [#allocation9], %s63
      %s65 = sshll.u32 [#allocation8], 4
      %s66 = int_to_ptr.vmem [resolvable:$true] %s65
      %71 = dma.hbm_to_vmem [thread:$0]  %s6, 1024, %s66, [#allocation9], 128, 128, 8
    $region29: #{tpu_custom_call.1} parent=1 // pred_fallthru
      _
    // Predicated region
    $region30: #{tpu_custom_call.1} parent=1 // pred_check
      _
    $region31: #{tpu_custom_call.1} parent=1 // pred_check_branch
      %73 = sbr.rel (0) target = $region33
    $region32: #{tpu_custom_call.1} parent=1 // pred_region
      _
    $region33: #{tpu_custom_call.1} parent=1 // pred_fallthru
      _
    // Predicated region
    $region34: #{tpu_custom_call.1} parent=1 // pred_check
      _
    $region35: #{tpu_custom_call.1} parent=1 // pred_check_branch
      %75 = sbr.rel (0) target = $region37
    $region36: #{tpu_custom_call.1} parent=1 // pred_region
      %s77 = ssub.s32 512, 512
      %78 = vsyncadd [#allocation9], %s77
      %s79 = sshll.u32 [#allocation10], 4
      %s80 = int_to_ptr.vmem [resolvable:$true] %s79
      %85 = dma.hbm_to_vmem [thread:$0]  %s8, 512, %s80, [#allocation9], 128, 128, 8
    $region37: #{tpu_custom_call.1} parent=1 // pred_fallthru
      _
    // Predicated region
    $region38: #{tpu_custom_call.1} parent=1 // pred_check
      _
    $region39: #{tpu_custom_call.1} parent=1 // pred_check_branch
      %87 = sbr.rel (0) target = $region41
    $region40: #{tpu_custom_call.1} parent=1 // pred_region
      _
    $region41: #{tpu_custom_call.1} parent=1 // pred_fallthru
      _
    // Predicated region
    $region42: #{tpu_custom_call.1} parent=1 // pred_check
      _
    $region43: #{tpu_custom_call.1} parent=1 // pred_check_branch
      %89 = sbr.rel (0) target = $region45
    $region44: #{tpu_custom_call.1} parent=1 // pred_region
      %90 = dma.done [#allocation3], 128
    $region45: #{tpu_custom_call.1} parent=1 // pred_fallthru
      _
    // Predicated region
    $region46: #{tpu_custom_call.1} parent=1 // pred_check
      _
    $region47: #{tpu_custom_call.1} parent=1 // pred_check_branch
      %92 = sbr.rel (0) target = $region49
    $region48: #{tpu_custom_call.1} parent=1 // pred_region
      %93 = dma.done [#allocation6], 128
    $region49: #{tpu_custom_call.1} parent=1 // pred_fallthru
      _
    // Predicated region
    $region50: #{tpu_custom_call.1} parent=1 // pred_check
      _
    $region51: #{tpu_custom_call.1} parent=1 // pred_check_branch
      %95 = sbr.rel (0) target = $region53
    $region52: #{tpu_custom_call.1} parent=1 // pred_region
      %96 = dma.done [#allocation6], 384
    $region53: #{tpu_custom_call.1} parent=1 // pred_fallthru
      _
    // Predicated region
    $region54: #{tpu_custom_call.1} parent=1 // pred_check
      _
    $region55: #{tpu_custom_call.1} parent=1 // pred_check_branch
      %98 = sbr.rel (0) target = $region57
    $region56: #{tpu_custom_call.1} parent=1 // pred_region
      %99 = dma.done [#allocation9], 1024
    $region57: #{tpu_custom_call.1} parent=1 // pred_fallthru
      _
    // Predicated region
    $region58: #{tpu_custom_call.1} parent=1 // pred_check
      _
    $region59: #{tpu_custom_call.1} parent=1 // pred_check_branch
      %101 = sbr.rel (0) target = $region61
    $region60: #{tpu_custom_call.1} parent=1 // pred_region
      %102 = dma.done [#allocation9], 512
    $region61: #{tpu_custom_call.1} parent=1 // pred_fallthru
      _
    %p103 = scmp.eq.s32.totalorder 0, 0
    // Predicated region
    $region62: #{tpu_custom_call.1} parent=1 // pred_check
      %p104 = pneg %p103
    $region63: #{tpu_custom_call.1} parent=1 // pred_check_branch
      %106 = sbr.rel (%p104) target = $region65
    $region64: #{tpu_custom_call.1} parent=1 // pred_region
      %v107 = vld [vmem:[#allocation5] sm:$0xff]
      %vm108 = vcmask 261120
      %109 = vst.msk [vmem:[#allocation12] sm:$0xff] %vm108, %v107
    $region65: #{tpu_custom_call.1} parent=1 // pred_fallthru
      _
    %v110 = vld [vmem:[#allocation2] sm:$0xff]
    %v111 = vld [vmem:[#allocation7] sm:$0xff]
    %v112 = vld [vmem:[#allocation7 + $0x8] sm:$0xff]
    %v113 = vld [vmem:[#allocation7 + $0x10] sm:$0xff]
    %v114 = vld [vmem:[%s3] sm:$0x1]
    %v116 = vlaneseq
    %v117 = vshrl.u32 %v116, 7
    %v118 = vsub.s32 0, %v117
    %v119 = vrot.slane %v114, %v118
    %vm121 = vcmask 195584
    %v123 = vsel %vm121, %v110, 0
    %125 = vmatprep.subr.mxu0 0.0
    %126 = vmatpush1.msra.mxu0 %v111
    %127 = vmatprep.subr.mxu0 0.0
    %128 = vmatpush1.msra.mxu0 %v112
    %129 = vmatprep.subr.mxu0 0.0
    %130 = vmatpush1.msra.mxu0 %v113
    %131 = vmatprep.subr.mxu0 0.0
    %132 = vmatpush1.msra.mxu0 0.0
    %133 = vmatprep.subr.mxu0 0.0
    %134 = vmatpush1.msra.mxu0 0.0
    %135 = vmatprep.subr.mxu0 0.0
    %136 = vmatpush1.msra.mxu0 0.0
    %137 = vmatprep.subr.mxu0 0.0
    %138 = vmatpush1.msra.mxu0 0.0
    %139 = vmatprep.subr.mxu0 0.0
    %140 = vmatpush1.msra.mxu0 0.0
    %141 = vmatprep.subr.mxu0 0.0
    %142 = vmatpush1.msra.mxu0 0.0
    %143 = vmatprep.subr.mxu0 0.0
    %144 = vmatpush1.msra.mxu0 0.0
    %145 = vmatprep.subr.mxu0 0.0
    %146 = vmatpush1.msra.mxu0 0.0
    %147 = vmatprep.subr.mxu0 0.0
    %148 = vmatpush1.msra.mxu0 0.0
    %149 = vmatprep.subr.mxu0 0.0
    %150 = vmatpush1.msra.mxu0 0.0
    %151 = vmatprep.subr.mxu0 0.0
    %152 = vmatpush1.msra.mxu0 0.0
    %153 = vmatprep.subr.mxu0 0.0
    %154 = vmatpush1.msra.mxu0 0.0
    %155 = vmatprep.subr.mxu0 0.0
    %156 = vmatpush1.msra.mxu0 0.0
    %157 = vmatprep.subr.mxu0 0.0
    %158 = vmatpush1.msra.mxu0 0.0
    %159 = vmatprep.subr.mxu0 0.0
    %160 = vmatpush1.msra.mxu0 0.0
    %161 = vmatprep.subr.mxu0 0.0
    %162 = vmatpush1.msra.mxu0 0.0
    %163 = vmatprep.subr.mxu0 0.0
    %164 = vmatpush1.msra.mxu0 0.0
    %165 = vmatprep.subr.mxu0 0.0
    %166 = vmatpush1.msra.mxu0 0.0
    %167 = vmatprep.subr.mxu0 0.0
    %168 = vmatpush1.msra.mxu0 0.0
    %169 = vmatprep.subr.mxu0 0.0
    %170 = vmatpush1.msra.mxu0 0.0
    %171 = vmatprep.subr.mxu0 0.0
    %172 = vmatpush1.msra.mxu0 0.0
    %173 = vmatprep.subr.mxu0 0.0
    %174 = vmatpush1.msra.mxu0 0.0
    %175 = vmatprep.subr.mxu0 0.0
    %176 = vmatpush1.msra.mxu0 0.0
    %177 = vmatprep.subr.mxu0 0.0
    %178 = vmatpush1.msra.mxu0 0.0
    %179 = vmatprep.subr.mxu0 0.0
    %180 = vmatpush1.msra.mxu0 0.0
    %181 = vmatprep.subr.mxu0 0.0
    %182 = vmatpush1.msra.mxu0 0.0
    %183 = vmatprep.subr.mxu0 0.0
    %184 = vmatpush1.msra.mxu0 0.0
    %185 = vmatprep.subr.mxu0 0.0
    %186 = vmatpush1.msra.mxu0 0.0
    %187 = vmatprep.subr.mxu0 0.0
    %188 = vmatpush1.msra.mxu0 0.0
    %189 = vmatprep.mubr.f32.mxu0 0.0
    %190 = vmatmul.mubr.f32.gmra.mrb[0].mxu0 %v123
    %v191 = vpop.f32.mrb[0].mxu0
    %v192 = vadd.f32 %v119, %v191
    %v193 = vpop.f32.mrb[0].mxu0
    %194 = vdwg.mxu0
    %vm195 = vcmask 261120
    %v196 = vsel %vm195, %v192, 0.0
    %197 = vadd.xlane.f32.xlu0 %v196
    %v198 = vpop.xlane.xlu0 %197
    %v199 = vrcp.pop 32.0
    %v200 = vmul.f32 %v198, %v199
    %v201 = vsub.f32 %v192, %v200
    %v202 = vmul.f32 %v201, %v201
    %v203 = vsel %vm195, %v202, 0.0
    %204 = vadd.xlane.f32.xlu0 %v203
    %v205 = vpop.xlane.xlu0 %204
    %v206 = vmul.f32 %v205, %v199
    %v207 = vadd.f32 %v206, 1e-05
    %v208 = vrsqrt.pop %v207
    %v209 = vmul.f32 %v201, %v208
    %v210 = vld [vmem:[%s4] sm:$0x1]
    %v212 = vlaneseq
    %v213 = vshrl.u32 %v212, 7
    %v214 = vsub.s32 0, %v213
    %v215 = vrot.slane %v210, %v214
    %v217 = vmul.f32 %v209, %v215
    %v218 = vld [vmem:[%s5] sm:$0x1]
    %v220 = vlaneseq
    %v221 = vshrl.u32 %v220, 7
    %v222 = vsub.s32 0, %v221
    %v223 = vrot.slane %v218, %v222
    %v225 = vadd.f32 %v217, %v223
    %v226 = vmax.f32 %v225, 0.0
    %v227 = vld [vmem:[#allocation12] sm:$0xff]
    %229 = vrot.lane.b32.xlu0 %v227, 32
    %v230 = vpop.permute.xlu0 %229
    %v232 = vsel %vm195, %v226, %v230
    %v233 = vld [vmem:[#allocation8] sm:$0xff]
    %v234 = vld [vmem:[#allocation8 + $0x8] sm:$0xff]
    %v235 = vld [vmem:[#allocation8 + $0x10] sm:$0xff]
    %v236 = vld [vmem:[#allocation8 + $0x18] sm:$0xff]
    %v237 = vld [vmem:[#allocation8 + $0x20] sm:$0xff]
    %v238 = vld [vmem:[#allocation8 + $0x28] sm:$0xff]
    %v239 = vld [vmem:[#allocation8 + $0x30] sm:$0xff]
    %v240 = vld [vmem:[#allocation8 + $0x38] sm:$0xff]
    %v241 = vld [vmem:[%s7] sm:$0x1]
    %v243 = vlaneseq
    %v244 = vshrl.u32 %v243, 7
    %v245 = vsub.s32 0, %v244
    %v246 = vrot.slane %v241, %v245
    %vm248 = vcmask 523264
    %v250 = vsel %vm248, %v232, 0
    %252 = vmatprep.subr.mxu0 0.0
    %253 = vmatpush1.msra.mxu0 %v233
    %254 = vmatprep.subr.mxu0 0.0
    %255 = vmatpush1.msra.mxu0 %v234
    %256 = vmatprep.subr.mxu0 0.0
    %257 = vmatpush1.msra.mxu0 %v235
    %258 = vmatprep.subr.mxu0 0.0
    %259 = vmatpush1.msra.mxu0 %v236
    %260 = vmatprep.subr.mxu0 0.0
    %261 = vmatpush1.msra.mxu0 %v237
    %262 = vmatprep.subr.mxu0 0.0
    %263 = vmatpush1.msra.mxu0 %v238
    %264 = vmatprep.subr.mxu0 0.0
    %265 = vmatpush1.msra.mxu0 %v239
    %266 = vmatprep.subr.mxu0 0.0
    %267 = vmatpush1.msra.mxu0 %v240
    %268 = vmatprep.subr.mxu0 0.0
    %269 = vmatpush1.msra.mxu0 0.0
    %270 = vmatprep.subr.mxu0 0.0
    %271 = vmatpush1.msra.mxu0 0.0
    %272 = vmatprep.subr.mxu0 0.0
    %273 = vmatpush1.msra.mxu0 0.0
    %274 = vmatprep.subr.mxu0 0.0
    %275 = vmatpush1.msra.mxu0 0.0
    %276 = vmatprep.subr.mxu0 0.0
    %277 = vmatpush1.msra.mxu0 0.0
    %278 = vmatprep.subr.mxu0 0.0
    %279 = vmatpush1.msra.mxu0 0.0
    %280 = vmatprep.subr.mxu0 0.0
    %281 = vmatpush1.msra.mxu0 0.0
    %282 = vmatprep.subr.mxu0 0.0
    %283 = vmatpush1.msra.mxu0 0.0
    %284 = vmatprep.subr.mxu0 0.0
    %285 = vmatpush1.msra.mxu0 0.0
    %286 = vmatprep.subr.mxu0 0.0
    %287 = vmatpush1.msra.mxu0 0.0
    %288 = vmatprep.subr.mxu0 0.0
    %289 = vmatpush1.msra.mxu0 0.0
    %290 = vmatprep.subr.mxu0 0.0
    %291 = vmatpush1.msra.mxu0 0.0
    %292 = vmatprep.subr.mxu0 0.0
    %293 = vmatpush1.msra.mxu0 0.0
    %294 = vmatprep.subr.mxu0 0.0
    %295 = vmatpush1.msra.mxu0 0.0
    %296 = vmatprep.subr.mxu0 0.0
    %297 = vmatpush1.msra.mxu0 0.0
    %298 = vmatprep.subr.mxu0 0.0
    %299 = vmatpush1.msra.mxu0 0.0
    %300 = vmatprep.subr.mxu0 0.0
    %301 = vmatpush1.msra.mxu0 0.0
    %302 = vmatprep.subr.mxu0 0.0
    %303 = vmatpush1.msra.mxu0 0.0
    %304 = vmatprep.subr.mxu0 0.0
    %305 = vmatpush1.msra.mxu0 0.0
    %306 = vmatprep.subr.mxu0 0.0
    %307 = vmatpush1.msra.mxu0 0.0
    %308 = vmatprep.subr.mxu0 0.0
    %309 = vmatpush1.msra.mxu0 0.0
    %310 = vmatprep.subr.mxu0 0.0
    %311 = vmatpush1.msra.mxu0 0.0
    %312 = vmatprep.subr.mxu0 0.0
    %313 = vmatpush1.msra.mxu0 0.0
    %314 = vmatprep.subr.mxu0 0.0
    %315 = vmatpush1.msra.mxu0 0.0
    %316 = vmatprep.mubr.f32.mxu0 0.0
    %317 = vmatmul.mubr.f32.gmra.mrb[0].mxu0 %v250
    %v318 = vpop.f32.mrb[0].mxu0
    %v319 = vadd.f32 %v246, %v318
    %v320 = vpop.f32.mrb[0].mxu0
    %321 = vdwg.mxu0
    %v322 = vxor.u32 %v319, 2147483648
    %v323 = vmul.f32 %v322, 1.442695
    %v324 = vpow.pop %v323
    %v325 = vadd.f32 %v324, 1.0
    %v326 = vrcp.pop %v325
    %v327 = vmul.f32 1.0, %v326
    %329 = vrot.lane.b32.xlu0 %v319, 32
    %v330 = vpop.permute.xlu0 %329
    %v332 = vmul.f32 %v327, %v330
    %334 = vrot.lane.b32.xlu0 %v332, 64
    %v335 = vpop.permute.xlu0 %334
    %v337 = vadd.f32 %v319, %v335
    %v338 = vtanh.pop %v337
    %v339 = vsub.f32 1.0, %v327
    %341 = vrot.lane.b32.xlu0 %v338, 96
    %v342 = vpop.permute.xlu0 %341
    %v344 = vmul.f32 %v339, %v342
    %v345 = vmul.f32 %v327, %v230
    %v346 = vadd.f32 %v344, %v345
    %348 = vrot.lane.b32.xlu0 %v346, 96
    %v349 = vpop.permute.xlu0 %348
    %351 = vst.msk [vmem:[#allocation12] sm:$0xff] %vm195, %v349
    %v352 = vld [vmem:[#allocation10] sm:$0xff]
    %v353 = vld [vmem:[#allocation10 + $0x8] sm:$0xff]
    %v354 = vld [vmem:[#allocation10 + $0x10] sm:$0xff]
    %v355 = vld [vmem:[#allocation10 + $0x18] sm:$0xff]
    %v356 = vld [vmem:[%s9] sm:$0x1]
    %v358 = vlaneseq
    %v359 = vshrl.u32 %v358, 7
    %v360 = vsub.s32 0, %v359
    %v361 = vrot.slane %v356, %v360
    %v363 = vsel %vm195, %v349, 0
    %365 = vmatprep.subr.mxu0 0.0
    %366 = vmatpush1.msra.mxu0 %v352
    %367 = vmatprep.subr.mxu0 0.0
    %368 = vmatpush1.msra.mxu0 %v353
    %369 = vmatprep.subr.mxu0 0.0
    %370 = vmatpush1.msra.mxu0 %v354
    %371 = vmatprep.subr.mxu0 0.0
    %372 = vmatpush1.msra.mxu0 %v355
    %373 = vmatprep.subr.mxu0 0.0
    %374 = vmatpush1.msra.mxu0 0.0
    %375 = vmatprep.subr.mxu0 0.0
    %376 = vmatpush1.msra.mxu0 0.0
    %377 = vmatprep.subr.mxu0 0.0
    %378 = vmatpush1.msra.mxu0 0.0
    %379 = vmatprep.subr.mxu0 0.0
    %380 = vmatpush1.msra.mxu0 0.0
    %381 = vmatprep.subr.mxu0 0.0
    %382 = vmatpush1.msra.mxu0 0.0
    %383 = vmatprep.subr.mxu0 0.0
    %384 = vmatpush1.msra.mxu0 0.0
    %385 = vmatprep.subr.mxu0 0.0
    %386 = vmatpush1.msra.mxu0 0.0
    %387 = vmatprep.subr.mxu0 0.0
    %388 = vmatpush1.msra.mxu0 0.0
    %389 = vmatprep.subr.mxu0 0.0
    %390 = vmatpush1.msra.mxu0 0.0
    %391 = vmatprep.subr.mxu0 0.0
    %392 = vmatpush1.msra.mxu0 0.0
    %393 = vmatprep.subr.mxu0 0.0
    %394 = vmatpush1.msra.mxu0 0.0
    %395 = vmatprep.subr.mxu0 0.0
    %396 = vmatpush1.msra.mxu0 0.0
    %397 = vmatprep.subr.mxu0 0.0
    %398 = vmatpush1.msra.mxu0 0.0
    %399 = vmatprep.subr.mxu0 0.0
    %400 = vmatpush1.msra.mxu0 0.0
    %401 = vmatprep.subr.mxu0 0.0
    %402 = vmatpush1.msra.mxu0 0.0
    %403 = vmatprep.subr.mxu0 0.0
    %404 = vmatpush1.msra.mxu0 0.0
    %405 = vmatprep.subr.mxu0 0.0
    %406 = vmatpush1.msra.mxu0 0.0
    %407 = vmatprep.subr.mxu0 0.0
    %408 = vmatpush1.msra.mxu0 0.0
    %409 = vmatprep.subr.mxu0 0.0
    %410 = vmatpush1.msra.mxu0 0.0
    %411 = vmatprep.subr.mxu0 0.0
    %412 = vmatpush1.msra.mxu0 0.0
    %413 = vmatprep.subr.mxu0 0.0
    %414 = vmatpush1.msra.mxu0 0.0
    %415 = vmatprep.subr.mxu0 0.0
    %416 = vmatpush1.msra.mxu0 0.0
    %417 = vmatprep.subr.mxu0 0.0
    %418 = vmatpush1.msra.mxu0 0.0
    %419 = vmatprep.subr.mxu0 0.0
    %420 = vmatpush1.msra.mxu0 0.0
    %421 = vmatprep.subr.mxu0 0.0
    %422 = vmatpush1.msra.mxu0 0.0
    %423 = vmatprep.subr.mxu0 0.0
    %424 = vmatpush1.msra.mxu0 0.0
    %425 = vmatprep.subr.mxu0 0.0
    %426 = vmatpush1.msra.mxu0 0.0
    %427 = vmatprep.subr.mxu0 0.0
    %428 = vmatpush1.msra.mxu0 0.0
    %429 = vmatprep.mubr.f32.mxu0 0.0
    %430 = vmatmul.mubr.f32.gmra.mrb[0].mxu0 %v363
    %v431 = vpop.f32.mrb[0].mxu0
    %v432 = vadd.f32 %v361, %v431
    %v433 = vpop.f32.mrb[0].mxu0
    %434 = vdwg.mxu0
    %v435 = vtanh.pop %v432
    %v436 = vadd.f32 %v435, 1.0
    %v437 = vmul.f32 %v436, 11.0
    %v438 = vadd.f32 %v437, -20.0
    %v439 = vlaneseq
    %v440 = vand.u32 %v439, 127
    %vm441 = vcmp.ge.s32.totalorder %v440, 6
    %v442 = vsel %vm441, %v438, %v432
    %443 = vst [vmem:[#allocation11] sm:$0xff] %v442
    // Predicated region
    $region66: #{tpu_custom_call.1} parent=1 // pred_check
      _
    $region67: #{tpu_custom_call.1} parent=1 // pred_check_branch
      %445 = sbr.rel (0) target = $region69
    $region68: #{tpu_custom_call.1} parent=1 // pred_region
      %s447 = ssub.s32 128, 128
      %448 = vsyncadd [#allocation4], %s447
      %s450 = sshll.u32 [#allocation11], 4
      %s451 = int_to_ptr.vmem [resolvable:$true] %s450
      %453 = dma.vmem_to_hbm [thread:$0]  %s451, 128, %s10, [#allocation4]
    $region69: #{tpu_custom_call.1} parent=1 // pred_fallthru
      _
    // Predicated region
    $region70: #{tpu_custom_call.1} parent=1 // pred_check
      _
    $region71: #{tpu_custom_call.1} parent=1 // pred_check_branch
      %455 = sbr.rel (0) target = $region73
    $region72: #{tpu_custom_call.1} parent=1 // pred_region
      %s457 = ssub.s32 128, 128
      %458 = vsyncadd [#allocation13], %s457
      %s460 = sshll.u32 [#allocation12], 4
      %s461 = int_to_ptr.vmem [resolvable:$true] %s460
      %463 = dma.vmem_to_hbm [thread:$0]  %s461, 128, %s11, [#allocation13]
    $region73: #{tpu_custom_call.1} parent=1 // pred_fallthru
      _
    // Predicated region
    $region74: #{tpu_custom_call.1} parent=1 // pred_check
      _
    $region75: #{tpu_custom_call.1} parent=1 // pred_check_branch
      %465 = sbr.rel (0) target = $region77
    $region76: #{tpu_custom_call.1} parent=1 // pred_region
      %466 = dma.done [#allocation4], 128
    $region77: #{tpu_custom_call.1} parent=1 // pred_fallthru
      _
    // Predicated region
    $region78: #{tpu_custom_call.1} parent=1 // pred_check
      _
    $region79: #{tpu_custom_call.1} parent=1 // pred_check_branch
      %468 = sbr.rel (0) target = $region81
    $region80: #{tpu_custom_call.1} parent=1 // pred_region
      %469 = dma.done [#allocation13], 128
    $region81: #{tpu_custom_call.1} parent=1 // pred_fallthru
      _
    %470 = vsyncpa [#allocation3], 1
    %471 = vsyncpa [#allocation6], 1
    %472 = vsyncpa [#allocation9], 1
    %473 = vsyncpa [#allocation4], 1
    %474 = vsyncpa [#allocation13], 1

</llo_original>
